<compile_context>
chip_gen: v7x
topology: tpu7x:2x2x1
jax: 0.10.0
libtpu: 0.0.40
codegen_flags: <defaults>
</compile_context>

<pallas_src>
import functools

import jax
import jax.numpy as jnp
from jax.experimental import pallas as pl
from jax.experimental.pallas import tpu as pltpu

NUM_CLASS = 10
NUM_HIDDEN = 200
NUM_INPUT = 28 * 28


def _round_up(x: int, m: int) -> int:
    return ((x + m - 1) // m) * m


def _mlp_kernel(x_ref, w1_ref, b1_ref, w2_ref, b2_ref, o_ref):
    # Layer 1 on the MXU with explicit f32 accumulation.
    h = jnp.dot(x_ref[...], w1_ref[...], preferred_element_type=jnp.float32)
    # Fused bias + ReLU on the f32 accumulator (VPU work, hides under MXU).
    h = jnp.maximum(h + b1_ref[...].astype(jnp.float32), 0.0)
    # Layer 2, still f32 accumulation; hidden activation never leaves VMEM.
    o = jnp.dot(h.astype(w2_ref.dtype), w2_ref[...],
                preferred_element_type=jnp.float32)
    o = o + b2_ref[...].astype(jnp.float32)
    # Lane-dense store: class dim padded to a multiple of 128 -> unmasked vst.
    o_ref[...] = o.astype(o_ref.dtype)


@functools.partial(jax.jit, static_argnames=("tile_b",))
def neural_net_forward(x, w1, b1, w2, b2, *, tile_b: int = 512):
    """Forward pass of NeuralNet.

    Args:
      x:  (B, num_input) activations.
      w1: (num_hidden, num_input)  -- PyTorch nn.Linear layout (out, in).
      b1: (num_hidden,)
      w2: (num_class, num_hidden)
      b2: (num_class,)
    Returns:
      (B, num_class) logits.
    """
    B, K = x.shape
    H = w1.shape[0]
    C = w2.shape[0]
    dtype = x.dtype
    itemsize = jnp.dtype(dtype).itemsize

    # Hidden / class dims padded to lane width; batch blocks are multiples of
    # 8 (f32 sublane granularity).
    H_pad = _round_up(H, 128)
    C_pad = _round_up(C, 128)

    # Batch handling: pad x (one HBM copy) ONLY when B is not a multiple of 8.
    # A ragged last grid step (B_pad % tile_b != 0) is handled by Pallas'
    # partial-block masking, so x never needs to be padded to a tile multiple
    # -- this avoids an extra HBM round-trip of the activations.
    B_pad = _round_up(B, 8)
    tile_b = max(8, min(_round_up(tile_b, 8), B_pad))
    x_in = x if B_pad == B else jnp.zeros((B_pad, K), dtype).at[:B].set(x)

    # Parameters in (in, out) layout. Zero padding is exact: padded hidden
    # units contribute nothing to layer 2, padded class cols are sliced off.
    w1_t = jnp.zeros((K, H_pad), dtype).at[:, :H].set(w1.T.astype(dtype))
    b1_p = jnp.zeros((1, H_pad), dtype).at[:, :H].set(b1.astype(dtype))
    w2_t = jnp.zeros((H_pad, C_pad), dtype).at[:H, :C].set(w2.T.astype(dtype))
    b2_p = jnp.zeros((1, C_pad), dtype).at[:, :C].set(b2.astype(dtype))

    # Explicit VMEM budget (double-buffered x/out tiles + resident weights +
    # f32 hidden intermediate), with headroom; safely below v7x's 64 MiB.
    vmem_bytes = (
        2 * tile_b * K * itemsize                 # x tile (double-buffered)
        + 2 * tile_b * C_pad * itemsize           # out tile (double-buffered)
        + 2 * (K * H_pad + H_pad) * itemsize      # W1 + b1 (resident)
        + 2 * (H_pad * C_pad + C_pad) * itemsize  # W2 + b2 (resident)
        + tile_b * H_pad * 4                      # f32 hidden activation
    )
    vmem_limit = int(min(max(2 * vmem_bytes, 16 << 20), 48 << 20))

    grid = (pl.cdiv(B_pad, tile_b),)
    grid_spec = pltpu.PrefetchScalarGridSpec(
        num_scalar_prefetch=0,
        grid=grid,
        in_specs=[
            pl.BlockSpec((tile_b, K), lambda i: (i, 0)),      # x: tiled over batch
            pl.BlockSpec((K, H_pad), lambda i: (0, 0)),       # W1: VMEM resident
            pl.BlockSpec((1, H_pad), lambda i: (0, 0)),       # b1: resident
            pl.BlockSpec((H_pad, C_pad), lambda i: (0, 0)),   # W2: resident
            pl.BlockSpec((1, C_pad), lambda i: (0, 0)),       # b2: resident
        ],
        out_specs=pl.BlockSpec((tile_b, C_pad), lambda i: (i, 0)),
    )

    out_padded = pl.pallas_call(
        _mlp_kernel,
        out_shape=jax.ShapeDtypeStruct((B_pad, C_pad), dtype),
        grid_spec=grid_spec,
        compiler_params=pltpu.CompilerParams(
            dimension_semantics=("parallel",),   # batch tiles shard across TCs
            vmem_limit_bytes=vmem_limit,
        ),
    )(x_in, w1_t, b1_p, w2_t, b2_p)

    return out_padded[:B, :C]


if __name__ == "__main__":
    key = jax.random.PRNGKey(0)
    kx, k1, k2, k3, k4 = jax.random.split(key, 5)

    batch = 8
    x = jax.random.normal(kx, (batch, NUM_INPUT), jnp.float32)
    # PyTorch nn.Linear parameter layout: weight (out_features, in_features).
    w1 = jax.random.normal(k1, (NUM_HIDDEN, NUM_INPUT), jnp.float32) * 0.05
    b1 = jax.random.normal(k2, (NUM_HIDDEN,), jnp.float32) * 0.05
    w2 = jax.random.normal(k3, (NUM_CLASS, NUM_HIDDEN), jnp.float32) * 0.05
    b2 = jax.random.normal(k4, (NUM_CLASS,), jnp.float32) * 0.05

    out = neural_net_forward(x, w1, b1, w2, b2)
    out = jax.block_until_ready(out)

    # Numerical check against a pure-JAX reference of the PyTorch forward.
    ref = jnp.maximum(x @ w1.T + b1, 0.0) @ w2.T + b2
    assert out.shape == (batch, NUM_CLASS), out.shape
    assert jnp.allclose(out, ref, atol=1e-4, rtol=1e-4), float(
        jnp.max(jnp.abs(out - ref))
    )

    print("KERNEL_OK")
</pallas_src>

<mosaic_0001>
module attributes {stable_mosaic.version = 11 : i64} {
  func.func @_mlp_kernel(%arg0: i32, %arg1: memref<8x784xf32, #tpu.memory_space<vmem>>, %arg2: memref<784x256xf32, #tpu.memory_space<vmem>>, %arg3: memref<1x256xf32, #tpu.memory_space<vmem>>, %arg4: memref<256x128xf32, #tpu.memory_space<vmem>>, %arg5: memref<1x128xf32, #tpu.memory_space<vmem>>, %arg6: memref<8x128xf32, #tpu.memory_space<vmem>>) attributes {dimension_semantics = [#tpu.dimension_semantics<parallel>], iteration_bounds = array<i64: 1>, scalar_prefetch = 0 : i64, scratch_operands = 0 : i64, tpu.core_type = #tpu.core_type<tc>, window_params = [{transform_indices = @transform_0, window_bounds = array<i64: 8, 784>}, {pipeline_mode = #tpu.pipeline_mode<synchronous>, transform_indices = @transform_1, window_bounds = array<i64: 784, 256>}, {pipeline_mode = #tpu.pipeline_mode<synchronous>, transform_indices = @transform_2, window_bounds = array<i64: 1, 256>}, {pipeline_mode = #tpu.pipeline_mode<synchronous>, transform_indices = @transform_3, window_bounds = array<i64: 256, 128>}, {pipeline_mode = #tpu.pipeline_mode<synchronous>, transform_indices = @transform_4, window_bounds = array<i64: 1, 128>}, {transform_indices = @transform_5, window_bounds = array<i64: 8, 128>}]} {
    %c0 = arith.constant 0 : index
    %c0_0 = arith.constant 0 : index
    %0 = vector.load %arg1[%c0, %c0_0] : memref<8x784xf32, #tpu.memory_space<vmem>>, vector<8x784xf32>
    %c0_1 = arith.constant 0 : index
    %c0_2 = arith.constant 0 : index
    %1 = vector.load %arg2[%c0_1, %c0_2] : memref<784x256xf32, #tpu.memory_space<vmem>>, vector<784x256xf32>
    %cst = arith.constant dense<0.000000e+00> : vector<8x256xf32>
    %2 = tpu.matmul %0, %1, %cst {dimension_numbers = #tpu.dot_dimension_numbers<[1], [0], [0], [1], [0, 0, 1, 1], [], []>} : vector<8x784xf32>, vector<784x256xf32>, vector<8x256xf32> -> vector<8x256xf32>
    %c0_3 = arith.constant 0 : index
    %c0_4 = arith.constant 0 : index
    %3 = vector.load %arg3[%c0_3, %c0_4] : memref<1x256xf32, #tpu.memory_space<vmem>>, vector<1x256xf32>
    %4 = vector.broadcast %3 : vector<1x256xf32> to vector<8x256xf32>
    %5 = arith.addf %2, %4 : vector<8x256xf32>
    %cst_5 = arith.constant 0.000000e+00 : f32
    %6 = vector.broadcast %cst_5 : f32 to vector<8x256xf32>
    %7 = arith.maximumf %5, %6 : vector<8x256xf32>
    %c0_6 = arith.constant 0 : index
    %c0_7 = arith.constant 0 : index
    %8 = vector.load %arg4[%c0_6, %c0_7] : memref<256x128xf32, #tpu.memory_space<vmem>>, vector<256x128xf32>
    %cst_8 = arith.constant dense<0.000000e+00> : vector<8x128xf32>
    %9 = tpu.matmul %7, %8, %cst_8 {dimension_numbers = #tpu.dot_dimension_numbers<[1], [0], [0], [1], [0, 0, 1, 1], [], []>} : vector<8x256xf32>, vector<256x128xf32>, vector<8x128xf32> -> vector<8x128xf32>
    %c0_9 = arith.constant 0 : index
    %c0_10 = arith.constant 0 : index
    %10 = vector.load %arg5[%c0_9, %c0_10] : memref<1x128xf32, #tpu.memory_space<vmem>>, vector<1x128xf32>
    %11 = vector.broadcast %10 : vector<1x128xf32> to vector<8x128xf32>
    %12 = arith.addf %9, %11 : vector<8x128xf32>
    %c0_11 = arith.constant 0 : index
    %c0_12 = arith.constant 0 : index
    %13 = vector.load %arg6[%c0_11, %c0_12] : memref<8x128xf32, #tpu.memory_space<vmem>>, vector<8x128xf32>
    tpu.vector_store %arg6[%c0_11, %c0_12], %12 {strides = array<i32>} : memref<8x128xf32, #tpu.memory_space<vmem>>, vector<8x128xf32>,
    return
  }
  func.func @transform_0(%arg0: i32) -> (i32, i32) {
    %c0_i32 = arith.constant 0 : i32
    %c0_i32_0 = arith.constant 0 : i32
    return %arg0, %c0_i32 : i32, i32
  }
  func.func @transform_1(%arg0: i32) -> (i32, i32) {
    %c0_i32 = arith.constant 0 : i32
    %c0_i32_0 = arith.constant 0 : i32
    %c0_i32_1 = arith.constant 0 : i32
    return %c0_i32, %c0_i32_0 : i32, i32
  }
  func.func @transform_2(%arg0: i32) -> (i32, i32) {
    %c0_i32 = arith.constant 0 : i32
    %c0_i32_0 = arith.constant 0 : i32
    %c0_i32_1 = arith.constant 0 : i32
    return %c0_i32, %c0_i32_0 : i32, i32
  }
  func.func @transform_3(%arg0: i32) -> (i32, i32) {
    %c0_i32 = arith.constant 0 : i32
    %c0_i32_0 = arith.constant 0 : i32
    %c0_i32_1 = arith.constant 0 : i32
    return %c0_i32, %c0_i32_0 : i32, i32
  }
  func.func @transform_4(%arg0: i32) -> (i32, i32) {
    %c0_i32 = arith.constant 0 : i32
    %c0_i32_0 = arith.constant 0 : i32
    %c0_i32_1 = arith.constant 0 : i32
    return %c0_i32, %c0_i32_0 : i32, i32
  }
  func.func @transform_5(%arg0: i32) -> (i32, i32) {
    %c0_i32 = arith.constant 0 : i32
    %c0_i32_0 = arith.constant 0 : i32
    return %arg0, %c0_i32 : i32, i32
  }
}

</mosaic_0001>

<llo_original>
// kernel: neural_net_forward.1
$region0: #{neural_net_forward.1}
  #allocation0 [shape = 'u32[]', space=smem, size = 0x4, offset = 0x4, fixed_abs, tag = 'smem constant byte address 0x4 - core index']
  #allocation1 [shape = 'u32[144,128]{1,0:T(1,128)}', space=vmem, size = 0x12000, scoped, tag = 'internal scratch']
  %s0 = inlined_call_operand.vmem [shape: f32[8,784], index: 0, kind: input, shape index: {}]
  %s1 = inlined_call_operand.vmem [shape: f32[784,256], index: 1, kind: input, shape index: {}]
  %s2 = inlined_call_operand.vmem [shape: f32[1,256], index: 2, kind: input, shape index: {}]
  %s3 = inlined_call_operand.vmem [shape: f32[256,128], index: 3, kind: input, shape index: {}]
  %s4 = inlined_call_operand.vmem [shape: f32[1,128], index: 4, kind: input, shape index: {}]
  %s5 = inlined_call_operand.hbm [shape: f32[8,128], index: 5, kind: output, shape index: {}]
  %s6 = sld [smem:[#allocation0]]
  $region30: #{neural_net_forward.1} parent=0
    _
  %s8 = ssub.s32 1, %s6
  %s9 = scalar_select 0, %s8, %s6
  $region1: #{neural_net_forward.1} parent=0
    #allocation2 [shape = 'u8[4096]{0}', space=vmem, size = 0x1000, scoped, tag = 'output window, operand 0, single buffered']
    #allocation3 [shape = 's32[1]{0}', space=sflag, size = 0x4, scoped, tag = 'scoped memory for neural_net_forward.1']
    %10 = vsyncpa [#allocation3], 0
    // Predicated region
    $region2: #{neural_net_forward.1} parent=1 // pred_check
      _
    $region3: #{neural_net_forward.1} parent=1 // pred_check_branch
      %12 = sbr.rel (0) target = $region5
    $region4: #{neural_net_forward.1} parent=1 // pred_region
      _
    $region5: #{neural_net_forward.1} parent=1 // pred_fallthru
      _
    // Predicated region
    $region6: #{neural_net_forward.1} parent=1 // pred_check
      _
    $region7: #{neural_net_forward.1} parent=1 // pred_check_branch
      %14 = sbr.rel (0) target = $region9
    $region8: #{neural_net_forward.1} parent=1 // pred_region
      _
    $region9: #{neural_net_forward.1} parent=1 // pred_fallthru
      _
    // Predicated region
    $region10: #{neural_net_forward.1} parent=1 // pred_check
      _
    $region11: #{neural_net_forward.1} parent=1 // pred_check_branch
      %16 = sbr.rel (0) target = $region13
    $region12: #{neural_net_forward.1} parent=1 // pred_region
      _
    $region13: #{neural_net_forward.1} parent=1 // pred_fallthru
      _
    // Predicated region
    $region14: #{neural_net_forward.1} parent=1 // pred_check
      _
    $region15: #{neural_net_forward.1} parent=1 // pred_check_branch
      %18 = sbr.rel (0) target = $region17
    $region16: #{neural_net_forward.1} parent=1 // pred_region
      _
    $region17: #{neural_net_forward.1} parent=1 // pred_fallthru
      _
    // Predicated region
    $region18: #{neural_net_forward.1} parent=1 // pred_check
      _
    $region19: #{neural_net_forward.1} parent=1 // pred_check_branch
      %20 = sbr.rel (0) target = $region21
    $region20: #{neural_net_forward.1} parent=1 // pred_region
      _
    $region21: #{neural_net_forward.1} parent=1 // pred_fallthru
      _
    %v21 = vld [vmem:[%s0] sm:$0xff]
    %v22 = vld [vmem:[%s0 + $0x8] sm:$0xff]
    %v23 = vld [vmem:[%s0 + $0x10] sm:$0xff]
    %v24 = vld [vmem:[%s0 + $0x18] sm:$0xff]
    %v25 = vld [vmem:[%s0 + $0x20] sm:$0xff]
    %v26 = vld [vmem:[%s0 + $0x28] sm:$0xff]
    %v27 = vld [vmem:[%s0 + $0x30] sm:$0xff]
    %v28 = vld [vmem:[%s1] sm:$0xff]
    %v29 = vld [vmem:[%s1 + $0x8] sm:$0xff]
    %v30 = vld [vmem:[%s1 + $0x10] sm:$0xff]
    %v31 = vld [vmem:[%s1 + $0x18] sm:$0xff]
    %v32 = vld [vmem:[%s1 + $0x20] sm:$0xff]
    %v33 = vld [vmem:[%s1 + $0x28] sm:$0xff]
    %v34 = vld [vmem:[%s1 + $0x30] sm:$0xff]
    %v35 = vld [vmem:[%s1 + $0x38] sm:$0xff]
    %v36 = vld [vmem:[%s1 + $0x40] sm:$0xff]
    %v37 = vld [vmem:[%s1 + $0x48] sm:$0xff]
    %v38 = vld [vmem:[%s1 + $0x50] sm:$0xff]
    %v39 = vld [vmem:[%s1 + $0x58] sm:$0xff]
    %v40 = vld [vmem:[%s1 + $0x60] sm:$0xff]
    %v41 = vld [vmem:[%s1 + $0x68] sm:$0xff]
    %v42 = vld [vmem:[%s1 + $0x70] sm:$0xff]
    %v43 = vld [vmem:[%s1 + $0x78] sm:$0xff]
    %v44 = vld [vmem:[%s1 + $0x80] sm:$0xff]
    %v45 = vld [vmem:[%s1 + $0x88] sm:$0xff]
    %v46 = vld [vmem:[%s1 + $0x90] sm:$0xff]
    %v47 = vld [vmem:[%s1 + $0x98] sm:$0xff]
    %v48 = vld [vmem:[%s1 + $0xa0] sm:$0xff]
    %v49 = vld [vmem:[%s1 + $0xa8] sm:$0xff]
    %v50 = vld [vmem:[%s1 + $0xb0] sm:$0xff]
    %v51 = vld [vmem:[%s1 + $0xb8] sm:$0xff]
    %v52 = vld [vmem:[%s1 + $0xc0] sm:$0xff]
    %v53 = vld [vmem:[%s1 + $0xc8] sm:$0xff]
    %v54 = vld [vmem:[%s1 + $0xd0] sm:$0xff]
    %v55 = vld [vmem:[%s1 + $0xd8] sm:$0xff]
    %v56 = vld [vmem:[%s1 + $0xe0] sm:$0xff]
    %v57 = vld [vmem:[%s1 + $0xe8] sm:$0xff]
    %v58 = vld [vmem:[%s1 + $0xf0] sm:$0xff]
    %v59 = vld [vmem:[%s1 + $0xf8] sm:$0xff]
    %v60 = vld [vmem:[%s1 + $0x100] sm:$0xff]
    %v61 = vld [vmem:[%s1 + $0x108] sm:$0xff]
    %v62 = vld [vmem:[%s1 + $0x110] sm:$0xff]
    %v63 = vld [vmem:[%s1 + $0x118] sm:$0xff]
    %v64 = vld [vmem:[%s1 + $0x120] sm:$0xff]
    %v65 = vld [vmem:[%s1 + $0x128] sm:$0xff]
    %v66 = vld [vmem:[%s1 + $0x130] sm:$0xff]
    %v67 = vld [vmem:[%s1 + $0x138] sm:$0xff]
    %v68 = vld [vmem:[%s1 + $0x140] sm:$0xff]
    %v69 = vld [vmem:[%s1 + $0x148] sm:$0xff]
    %v70 = vld [vmem:[%s1 + $0x150] sm:$0xff]
    %v71 = vld [vmem:[%s1 + $0x158] sm:$0xff]
    %v72 = vld [vmem:[%s1 + $0x160] sm:$0xff]
    %v73 = vld [vmem:[%s1 + $0x168] sm:$0xff]
    %v74 = vld [vmem:[%s1 + $0x170] sm:$0xff]
    %v75 = vld [vmem:[%s1 + $0x178] sm:$0xff]
    %v76 = vld [vmem:[%s1 + $0x180] sm:$0xff]
    %v77 = vld [vmem:[%s1 + $0x188] sm:$0xff]
    %v78 = vld [vmem:[%s1 + $0x190] sm:$0xff]
    %v79 = vld [vmem:[%s1 + $0x198] sm:$0xff]
    %v80 = vld [vmem:[%s1 + $0x1a0] sm:$0xff]
    %v81 = vld [vmem:[%s1 + $0x1a8] sm:$0xff]
    %v82 = vld [vmem:[%s1 + $0x1b0] sm:$0xff]
    %v83 = vld [vmem:[%s1 + $0x1b8] sm:$0xff]
    %v84 = vld [vmem:[%s1 + $0x1c0] sm:$0xff]
    %v85 = vld [vmem:[%s1 + $0x1c8] sm:$0xff]
    %v86 = vld [vmem:[%s1 + $0x1d0] sm:$0xff]
    %v87 = vld [vmem:[%s1 + $0x1d8] sm:$0xff]
    %v88 = vld [vmem:[%s1 + $0x1e0] sm:$0xff]
    %v89 = vld [vmem:[%s1 + $0x1e8] sm:$0xff]
    %v90 = vld [vmem:[%s1 + $0x1f0] sm:$0xff]
    %v91 = vld [vmem:[%s1 + $0x1f8] sm:$0xff]
    %v92 = vld [vmem:[%s1 + $0x200] sm:$0xff]
    %v93 = vld [vmem:[%s1 + $0x208] sm:$0xff]
    %v94 = vld [vmem:[%s1 + $0x210] sm:$0xff]
    %v95 = vld [vmem:[%s1 + $0x218] sm:$0xff]
    %v96 = vld [vmem:[%s1 + $0x220] sm:$0xff]
    %v97 = vld [vmem:[%s1 + $0x228] sm:$0xff]
    %v98 = vld [vmem:[%s1 + $0x230] sm:$0xff]
    %v99 = vld [vmem:[%s1 + $0x238] sm:$0xff]
    %v100 = vld [vmem:[%s1 + $0x240] sm:$0xff]
    %v101 = vld [vmem:[%s1 + $0x248] sm:$0xff]
    %v102 = vld [vmem:[%s1 + $0x250] sm:$0xff]
    %v103 = vld [vmem:[%s1 + $0x258] sm:$0xff]
    %v104 = vld [vmem:[%s1 + $0x260] sm:$0xff]
    %v105 = vld [vmem:[%s1 + $0x268] sm:$0xff]
    %v106 = vld [vmem:[%s1 + $0x270] sm:$0xff]
    %v107 = vld [vmem:[%s1 + $0x278] sm:$0xff]
    %v108 = vld [vmem:[%s1 + $0x280] sm:$0xff]
    %v109 = vld [vmem:[%s1 + $0x288] sm:$0xff]
    %v110 = vld [vmem:[%s1 + $0x290] sm:$0xff]
    %v111 = vld [vmem:[%s1 + $0x298] sm:$0xff]
    %v112 = vld [vmem:[%s1 + $0x2a0] sm:$0xff]
    %v113 = vld [vmem:[%s1 + $0x2a8] sm:$0xff]
    %v114 = vld [vmem:[%s1 + $0x2b0] sm:$0xff]
    %v115 = vld [vmem:[%s1 + $0x2b8] sm:$0xff]
    %v116 = vld [vmem:[%s1 + $0x2c0] sm:$0xff]
    %v117 = vld [vmem:[%s1 + $0x2c8] sm:$0xff]
    %v118 = vld [vmem:[%s1 + $0x2d0] sm:$0xff]
    %v119 = vld [vmem:[%s1 + $0x2d8] sm:$0xff]
    %v120 = vld [vmem:[%s1 + $0x2e0] sm:$0xff]
    %v121 = vld [vmem:[%s1 + $0x2e8] sm:$0xff]
    %v122 = vld [vmem:[%s1 + $0x2f0] sm:$0xff]
    %v123 = vld [vmem:[%s1 + $0x2f8] sm:$0xff]
    %v124 = vld [vmem:[%s1 + $0x300] sm:$0xff]
    %v125 = vld [vmem:[%s1 + $0x308] sm:$0xff]
    %v126 = vld [vmem:[%s1 + $0x310] sm:$0xff]
    %v127 = vld [vmem:[%s1 + $0x318] sm:$0xff]
    %v128 = vld [vmem:[%s1 + $0x320] sm:$0xff]
    %v129 = vld [vmem:[%s1 + $0x328] sm:$0xff]
    %v130 = vld [vmem:[%s1 + $0x330] sm:$0xff]
    %v131 = vld [vmem:[%s1 + $0x338] sm:$0xff]
    %v132 = vld [vmem:[%s1 + $0x340] sm:$0xff]
    %v133 = vld [vmem:[%s1 + $0x348] sm:$0xff]
    %v134 = vld [vmem:[%s1 + $0x350] sm:$0xff]
    %v135 = vld [vmem:[%s1 + $0x358] sm:$0xff]
    %v136 = vld [vmem:[%s1 + $0x360] sm:$0xff]
    %v137 = vld [vmem:[%s1 + $0x368] sm:$0xff]
    %v138 = vld [vmem:[%s1 + $0x370] sm:$0xff]
    %v139 = vld [vmem:[%s1 + $0x378] sm:$0xff]
    %v140 = vld [vmem:[%s1 + $0x380] sm:$0xff]
    %v141 = vld [vmem:[%s1 + $0x388] sm:$0xff]
    %v142 = vld [vmem:[%s1 + $0x390] sm:$0xff]
    %v143 = vld [vmem:[%s1 + $0x398] sm:$0xff]
    %v144 = vld [vmem:[%s1 + $0x3a0] sm:$0xff]
    %v145 = vld [vmem:[%s1 + $0x3a8] sm:$0xff]
    %v146 = vld [vmem:[%s1 + $0x3b0] sm:$0xff]
    %v147 = vld [vmem:[%s1 + $0x3b8] sm:$0xff]
    %v148 = vld [vmem:[%s1 + $0x3c0] sm:$0xff]
    %v149 = vld [vmem:[%s1 + $0x3c8] sm:$0xff]
    %v150 = vld [vmem:[%s1 + $0x3d0] sm:$0xff]
    %v151 = vld [vmem:[%s1 + $0x3d8] sm:$0xff]
    %v152 = vld [vmem:[%s1 + $0x3e0] sm:$0xff]
    %v153 = vld [vmem:[%s1 + $0x3e8] sm:$0xff]
    %v154 = vld [vmem:[%s1 + $0x3f0] sm:$0xff]
    %v155 = vld [vmem:[%s1 + $0x3f8] sm:$0xff]
    %v156 = vld [vmem:[%s1 + $0x400] sm:$0xff]
    %v157 = vld [vmem:[%s1 + $0x408] sm:$0xff]
    %v158 = vld [vmem:[%s1 + $0x410] sm:$0xff]
    %v159 = vld [vmem:[%s1 + $0x418] sm:$0xff]
    %v160 = vld [vmem:[%s1 + $0x420] sm:$0xff]
    %v161 = vld [vmem:[%s1 + $0x428] sm:$0xff]
    %v162 = vld [vmem:[%s1 + $0x430] sm:$0xff]
    %v163 = vld [vmem:[%s1 + $0x438] sm:$0xff]
    %v164 = vld [vmem:[%s1 + $0x440] sm:$0xff]
    %v165 = vld [vmem:[%s1 + $0x448] sm:$0xff]
    %v166 = vld [vmem:[%s1 + $0x450] sm:$0xff]
    %v167 = vld [vmem:[%s1 + $0x458] sm:$0xff]
    %v168 = vld [vmem:[%s1 + $0x460] sm:$0xff]
    %v169 = vld [vmem:[%s1 + $0x468] sm:$0xff]
    %v170 = vld [vmem:[%s1 + $0x470] sm:$0xff]
    %v171 = vld [vmem:[%s1 + $0x478] sm:$0xff]
    %v172 = vld [vmem:[%s1 + $0x480] sm:$0xff]
    %v173 = vld [vmem:[%s1 + $0x488] sm:$0xff]
    %v174 = vld [vmem:[%s1 + $0x490] sm:$0xff]
    %v175 = vld [vmem:[%s1 + $0x498] sm:$0xff]
    %v176 = vld [vmem:[%s1 + $0x4a0] sm:$0xff]
    %v177 = vld [vmem:[%s1 + $0x4a8] sm:$0xff]
    %v178 = vld [vmem:[%s1 + $0x4b0] sm:$0xff]
    %v179 = vld [vmem:[%s1 + $0x4b8] sm:$0xff]
    %v180 = vld [vmem:[%s1 + $0x4c0] sm:$0xff]
    %v181 = vld [vmem:[%s1 + $0x4c8] sm:$0xff]
    %v182 = vld [vmem:[%s1 + $0x4d0] sm:$0xff]
    %v183 = vld [vmem:[%s1 + $0x4d8] sm:$0xff]
    %v184 = vld [vmem:[%s1 + $0x4e0] sm:$0xff]
    %v185 = vld [vmem:[%s1 + $0x4e8] sm:$0xff]
    %v186 = vld [vmem:[%s1 + $0x4f0] sm:$0xff]
    %v187 = vld [vmem:[%s1 + $0x4f8] sm:$0xff]
    %v188 = vld [vmem:[%s1 + $0x500] sm:$0xff]
    %v189 = vld [vmem:[%s1 + $0x508] sm:$0xff]
    %v190 = vld [vmem:[%s1 + $0x510] sm:$0xff]
    %v191 = vld [vmem:[%s1 + $0x518] sm:$0xff]
    %v192 = vld [vmem:[%s1 + $0x520] sm:$0xff]
    %v193 = vld [vmem:[%s1 + $0x528] sm:$0xff]
    %v194 = vld [vmem:[%s1 + $0x530] sm:$0xff]
    %v195 = vld [vmem:[%s1 + $0x538] sm:$0xff]
    %v196 = vld [vmem:[%s1 + $0x540] sm:$0xff]
    %v197 = vld [vmem:[%s1 + $0x548] sm:$0xff]
    %v198 = vld [vmem:[%s1 + $0x550] sm:$0xff]
    %v199 = vld [vmem:[%s1 + $0x558] sm:$0xff]
    %v200 = vld [vmem:[%s1 + $0x560] sm:$0xff]
    %v201 = vld [vmem:[%s1 + $0x568] sm:$0xff]
    %v202 = vld [vmem:[%s1 + $0x570] sm:$0xff]
    %v203 = vld [vmem:[%s1 + $0x578] sm:$0xff]
    %v204 = vld [vmem:[%s1 + $0x580] sm:$0xff]
    %v205 = vld [vmem:[%s1 + $0x588] sm:$0xff]
    %v206 = vld [vmem:[%s1 + $0x590] sm:$0xff]
    %v207 = vld [vmem:[%s1 + $0x598] sm:$0xff]
    %v208 = vld [vmem:[%s1 + $0x5a0] sm:$0xff]
    %v209 = vld [vmem:[%s1 + $0x5a8] sm:$0xff]
    %v210 = vld [vmem:[%s1 + $0x5b0] sm:$0xff]
    %v211 = vld [vmem:[%s1 + $0x5b8] sm:$0xff]
    %v212 = vld [vmem:[%s1 + $0x5c0] sm:$0xff]
    %v213 = vld [vmem:[%s1 + $0x5c8] sm:$0xff]
    %v214 = vld [vmem:[%s1 + $0x5d0] sm:$0xff]
    %v215 = vld [vmem:[%s1 + $0x5d8] sm:$0xff]
    %v216 = vld [vmem:[%s1 + $0x5e0] sm:$0xff]
    %v217 = vld [vmem:[%s1 + $0x5e8] sm:$0xff]
    %v218 = vld [vmem:[%s1 + $0x5f0] sm:$0xff]
    %v219 = vld [vmem:[%s1 + $0x5f8] sm:$0xff]
    %v220 = vld [vmem:[%s1 + $0x600] sm:$0xff]
    %v221 = vld [vmem:[%s1 + $0x608] sm:$0xff]
    %v222 = vld [vmem:[%s1 + $0x610] sm:$0xff]
    %v223 = vld [vmem:[%s1 + $0x618] sm:$0xff]
    %v224 = vld [vmem:[%s2] sm:$0x3]
    %v226 = vlaneseq
    %v227 = vshrl.u32 %v226, 7
    %v228 = vsub.s32 0, %v227
    %v229 = vrot.slane %v224, %v228
    %v230 = vlaneseq
    %v231 = vshrl.u32 %v230, 7
    %v232 = vsub.s32 1, %v231
    %v233 = vrot.slane %v224, %v232
    %vm236 = vcmask 130048
    %v238 = vsel %vm236, %v27, 0
    %240 = vmatprep.subr.mxu0 %v29
    %241 = vmatpush1.msra.mxu0 %v28
    %242 = vmatprep.subr.mxu0 %v31
    %243 = vmatpush1.msra.mxu0 %v30
    %244 = vmatprep.subr.mxu0 %v33
    %245 = vmatpush1.msra.mxu0 %v32
    %246 = vmatprep.subr.mxu0 %v35
    %247 = vmatpush1.msra.mxu0 %v34
    %248 = vmatprep.subr.mxu0 %v37
    %249 = vmatpush1.msra.mxu0 %v36
    %250 = vmatprep.subr.mxu0 %v39
    %251 = vmatpush1.msra.mxu0 %v38
    %252 = vmatprep.subr.mxu0 %v41
    %253 = vmatpush1.msra.mxu0 %v40
    %254 = vmatprep.subr.mxu0 %v43
    %255 = vmatpush1.msra.mxu0 %v42
    %256 = vmatprep.subr.mxu0 %v45
    %257 = vmatpush1.msra.mxu0 %v44
    %258 = vmatprep.subr.mxu0 %v47
    %259 = vmatpush1.msra.mxu0 %v46
    %260 = vmatprep.subr.mxu0 %v49
    %261 = vmatpush1.msra.mxu0 %v48
    %262 = vmatprep.subr.mxu0 %v51
    %263 = vmatpush1.msra.mxu0 %v50
    %264 = vmatprep.subr.mxu0 %v53
    %265 = vmatpush1.msra.mxu0 %v52
    %266 = vmatprep.subr.mxu0 %v55
    %267 = vmatpush1.msra.mxu0 %v54
    %268 = vmatprep.subr.mxu0 %v57
    %269 = vmatpush1.msra.mxu0 %v56
    %270 = vmatprep.subr.mxu0 %v59
    %271 = vmatpush1.msra.mxu0 %v58
    %272 = vmatprep.subr.mxu0 %v61
    %273 = vmatpush1.msra.mxu0 %v60
    %274 = vmatprep.subr.mxu0 %v63
    %275 = vmatpush1.msra.mxu0 %v62
    %276 = vmatprep.subr.mxu0 %v65
    %277 = vmatpush1.msra.mxu0 %v64
    %278 = vmatprep.subr.mxu0 %v67
    %279 = vmatpush1.msra.mxu0 %v66
    %280 = vmatprep.subr.mxu0 %v69
    %281 = vmatpush1.msra.mxu0 %v68
    %282 = vmatprep.subr.mxu0 %v71
    %283 = vmatpush1.msra.mxu0 %v70
    %284 = vmatprep.subr.mxu0 %v73
    %285 = vmatpush1.msra.mxu0 %v72
    %286 = vmatprep.subr.mxu0 %v75
    %287 = vmatpush1.msra.mxu0 %v74
    %288 = vmatprep.subr.mxu0 %v77
    %289 = vmatpush1.msra.mxu0 %v76
    %290 = vmatprep.subr.mxu0 %v79
    %291 = vmatpush1.msra.mxu0 %v78
    %292 = vmatprep.subr.mxu0 %v81
    %293 = vmatpush1.msra.mxu0 %v80
    %294 = vmatprep.subr.mxu0 %v83
    %295 = vmatpush1.msra.mxu0 %v82
    %296 = vmatprep.subr.mxu0 %v85
    %297 = vmatpush1.msra.mxu0 %v84
    %298 = vmatprep.subr.mxu0 %v87
    %299 = vmatpush1.msra.mxu0 %v86
    %300 = vmatprep.subr.mxu0 %v89
    %301 = vmatpush1.msra.mxu0 %v88
    %302 = vmatprep.subr.mxu0 %v91
    %303 = vmatpush1.msra.mxu0 %v90
    %304 = vmatprep.mubr.f32.mxu0 %v22
    %305 = vmatmul.mubr.f32.gmra.mrb[0].mxu0 %v21
    %v306 = vpop.f32.mrb[0].mxu0
    %v307 = vadd.f32 %v229, %v306
    %v308 = vpop.f32.mrb[0].mxu0
    %v309 = vadd.f32 %v233, %v308
    %310 = vdwg.mxu0
    %311 = vmatprep.subr.mxu0 %v93
    %312 = vmatpush1.msra.mxu0 %v92
    %313 = vmatprep.subr.mxu0 %v95
    %314 = vmatpush1.msra.mxu0 %v94
    %315 = vmatprep.subr.mxu0 %v97
    %316 = vmatpush1.msra.mxu0 %v96
    %317 = vmatprep.subr.mxu0 %v99
    %318 = vmatpush1.msra.mxu0 %v98
    %319 = vmatprep.subr.mxu0 %v101
    %320 = vmatpush1.msra.mxu0 %v100
    %321 = vmatprep.subr.mxu0 %v103
    %322 = vmatpush1.msra.mxu0 %v102
    %323 = vmatprep.subr.mxu0 %v105
    %324 = vmatpush1.msra.mxu0 %v104
    %325 = vmatprep.subr.mxu0 %v107
    %326 = vmatpush1.msra.mxu0 %v106
    %327 = vmatprep.subr.mxu0 %v109
    %328 = vmatpush1.msra.mxu0 %v108
    %329 = vmatprep.subr.mxu0 %v111
    %330 = vmatpush1.msra.mxu0 %v110
    %331 = vmatprep.subr.mxu0 %v113
    %332 = vmatpush1.msra.mxu0 %v112
    %333 = vmatprep.subr.mxu0 %v115
    %334 = vmatpush1.msra.mxu0 %v114
    %335 = vmatprep.subr.mxu0 %v117
    %336 = vmatpush1.msra.mxu0 %v116
    %337 = vmatprep.subr.mxu0 %v119
    %338 = vmatpush1.msra.mxu0 %v118
    %339 = vmatprep.subr.mxu0 %v121
    %340 = vmatpush1.msra.mxu0 %v120
    %341 = vmatprep.subr.mxu0 %v123
    %342 = vmatpush1.msra.mxu0 %v122
    %343 = vmatprep.subr.mxu0 %v125
    %344 = vmatpush1.msra.mxu0 %v124
    %345 = vmatprep.subr.mxu0 %v127
    %346 = vmatpush1.msra.mxu0 %v126
    %347 = vmatprep.subr.mxu0 %v129
    %348 = vmatpush1.msra.mxu0 %v128
    %349 = vmatprep.subr.mxu0 %v131
    %350 = vmatpush1.msra.mxu0 %v130
    %351 = vmatprep.subr.mxu0 %v133
    %352 = vmatpush1.msra.mxu0 %v132
    %353 = vmatprep.subr.mxu0 %v135
    %354 = vmatpush1.msra.mxu0 %v134
    %355 = vmatprep.subr.mxu0 %v137
    %356 = vmatpush1.msra.mxu0 %v136
    %357 = vmatprep.subr.mxu0 %v139
    %358 = vmatpush1.msra.mxu0 %v138
    %359 = vmatprep.subr.mxu0 %v141
    %360 = vmatpush1.msra.mxu0 %v140
    %361 = vmatprep.subr.mxu0 %v143
    %362 = vmatpush1.msra.mxu0 %v142
    %363 = vmatprep.subr.mxu0 %v145
    %364 = vmatpush1.msra.mxu0 %v144
    %365 = vmatprep.subr.mxu0 %v147
    %366 = vmatpush1.msra.mxu0 %v146
    %367 = vmatprep.subr.mxu0 %v149
    %368 = vmatpush1.msra.mxu0 %v148
    %369 = vmatprep.subr.mxu0 %v151
    %370 = vmatpush1.msra.mxu0 %v150
    %371 = vmatprep.subr.mxu0 %v153
    %372 = vmatpush1.msra.mxu0 %v152
    %373 = vmatprep.subr.mxu0 %v155
    %374 = vmatpush1.msra.mxu0 %v154
    %375 = vmatprep.mubr.f32.mxu0 %v24
    %376 = vmatmul.mubr.f32.gmra.mrb[0].mxu0 %v23
    %v377 = vpop.f32.mrb[0].mxu0
    %v378 = vadd.f32 %v307, %v377
    %v379 = vpop.f32.mrb[0].mxu0
    %v380 = vadd.f32 %v309, %v379
    %381 = vdwg.mxu0
    %382 = vmatprep.subr.mxu0 %v157
    %383 = vmatpush1.msra.mxu0 %v156
    %384 = vmatprep.subr.mxu0 %v159
    %385 = vmatpush1.msra.mxu0 %v158
    %386 = vmatprep.subr.mxu0 %v161
    %387 = vmatpush1.msra.mxu0 %v160
    %388 = vmatprep.subr.mxu0 %v163
    %389 = vmatpush1.msra.mxu0 %v162
    %390 = vmatprep.subr.mxu0 %v165
    %391 = vmatpush1.msra.mxu0 %v164
    %392 = vmatprep.subr.mxu0 %v167
    %393 = vmatpush1.msra.mxu0 %v166
    %394 = vmatprep.subr.mxu0 %v169
    %395 = vmatpush1.msra.mxu0 %v168
    %396 = vmatprep.subr.mxu0 %v171
    %397 = vmatpush1.msra.mxu0 %v170
    %398 = vmatprep.subr.mxu0 %v173
    %399 = vmatpush1.msra.mxu0 %v172
    %400 = vmatprep.subr.mxu0 %v175
    %401 = vmatpush1.msra.mxu0 %v174
    %402 = vmatprep.subr.mxu0 %v177
    %403 = vmatpush1.msra.mxu0 %v176
    %404 = vmatprep.subr.mxu0 %v179
    %405 = vmatpush1.msra.mxu0 %v178
    %406 = vmatprep.subr.mxu0 %v181
    %407 = vmatpush1.msra.mxu0 %v180
    %408 = vmatprep.subr.mxu0 %v183
    %409 = vmatpush1.msra.mxu0 %v182
    %410 = vmatprep.subr.mxu0 %v185
    %411 = vmatpush1.msra.mxu0 %v184
    %412 = vmatprep.subr.mxu0 %v187
    %413 = vmatpush1.msra.mxu0 %v186
    %414 = vmatprep.subr.mxu0 %v189
    %415 = vmatpush1.msra.mxu0 %v188
    %416 = vmatprep.subr.mxu0 %v191
    %417 = vmatpush1.msra.mxu0 %v190
    %418 = vmatprep.subr.mxu0 %v193
    %419 = vmatpush1.msra.mxu0 %v192
    %420 = vmatprep.subr.mxu0 %v195
    %421 = vmatpush1.msra.mxu0 %v194
    %422 = vmatprep.subr.mxu0 %v197
    %423 = vmatpush1.msra.mxu0 %v196
    %424 = vmatprep.subr.mxu0 %v199
    %425 = vmatpush1.msra.mxu0 %v198
    %426 = vmatprep.subr.mxu0 %v201
    %427 = vmatpush1.msra.mxu0 %v200
    %428 = vmatprep.subr.mxu0 %v203
    %429 = vmatpush1.msra.mxu0 %v202
    %430 = vmatprep.subr.mxu0 %v205
    %431 = vmatpush1.msra.mxu0 %v204
    %432 = vmatprep.subr.mxu0 %v207
    %433 = vmatpush1.msra.mxu0 %v206
    %434 = vmatprep.subr.mxu0 %v209
    %435 = vmatpush1.msra.mxu0 %v208
    %436 = vmatprep.subr.mxu0 %v211
    %437 = vmatpush1.msra.mxu0 %v210
    %438 = vmatprep.subr.mxu0 %v213
    %439 = vmatpush1.msra.mxu0 %v212
    %440 = vmatprep.subr.mxu0 %v215
    %441 = vmatpush1.msra.mxu0 %v214
    %442 = vmatprep.subr.mxu0 %v217
    %443 = vmatpush1.msra.mxu0 %v216
    %444 = vmatprep.subr.mxu0 %v219
    %445 = vmatpush1.msra.mxu0 %v218
    %446 = vmatprep.mubr.f32.mxu0 %v26
    %447 = vmatmul.mubr.f32.gmra.mrb[0].mxu0 %v25
    %v448 = vpop.f32.mrb[0].mxu0
    %v449 = vadd.f32 %v378, %v448
    %v450 = vpop.f32.mrb[0].mxu0
    %v451 = vadd.f32 %v380, %v450
    %452 = vdwg.mxu0
    %453 = vmatprep.subr.mxu0 %v221
    %454 = vmatpush1.msra.mxu0 %v220
    %455 = vmatprep.subr.mxu0 %v223
    %456 = vmatpush1.msra.mxu0 %v222
    %457 = vmatprep.subr.mxu0 0.0
    %458 = vmatpush1.msra.mxu0 0.0
    %459 = vmatprep.subr.mxu0 0.0
    %460 = vmatpush1.msra.mxu0 0.0
    %461 = vmatprep.subr.mxu0 0.0
    %462 = vmatpush1.msra.mxu0 0.0
    %463 = vmatprep.subr.mxu0 0.0
    %464 = vmatpush1.msra.mxu0 0.0
    %465 = vmatprep.subr.mxu0 0.0
    %466 = vmatpush1.msra.mxu0 0.0
    %467 = vmatprep.subr.mxu0 0.0
    %468 = vmatpush1.msra.mxu0 0.0
    %469 = vmatprep.subr.mxu0 0.0
    %470 = vmatpush1.msra.mxu0 0.0
    %471 = vmatprep.subr.mxu0 0.0
    %472 = vmatpush1.msra.mxu0 0.0
    %473 = vmatprep.subr.mxu0 0.0
    %474 = vmatpush1.msra.mxu0 0.0
    %475 = vmatprep.subr.mxu0 0.0
    %476 = vmatpush1.msra.mxu0 0.0
    %477 = vmatprep.subr.mxu0 0.0
    %478 = vmatpush1.msra.mxu0 0.0
    %479 = vmatprep.subr.mxu0 0.0
    %480 = vmatpush1.msra.mxu0 0.0
    %481 = vmatprep.subr.mxu0 0.0
    %482 = vmatpush1.msra.mxu0 0.0
    %483 = vmatprep.subr.mxu0 0.0
    %484 = vmatpush1.msra.mxu0 0.0
    %485 = vmatprep.subr.mxu0 0.0
    %486 = vmatpush1.msra.mxu0 0.0
    %487 = vmatprep.subr.mxu0 0.0
    %488 = vmatpush1.msra.mxu0 0.0
    %489 = vmatprep.subr.mxu0 0.0
    %490 = vmatpush1.msra.mxu0 0.0
    %491 = vmatprep.subr.mxu0 0.0
    %492 = vmatpush1.msra.mxu0 0.0
    %493 = vmatprep.subr.mxu0 0.0
    %494 = vmatpush1.msra.mxu0 0.0
    %495 = vmatprep.subr.mxu0 0.0
    %496 = vmatpush1.msra.mxu0 0.0
    %497 = vmatprep.subr.mxu0 0.0
    %498 = vmatpush1.msra.mxu0 0.0
    %499 = vmatprep.subr.mxu0 0.0
    %500 = vmatpush1.msra.mxu0 0.0
    %501 = vmatprep.subr.mxu0 0.0
    %502 = vmatpush1.msra.mxu0 0.0
    %503 = vmatprep.subr.mxu0 0.0
    %504 = vmatpush1.msra.mxu0 0.0
    %505 = vmatprep.subr.mxu0 0.0
    %506 = vmatpush1.msra.mxu0 0.0
    %507 = vmatprep.subr.mxu0 0.0
    %508 = vmatpush1.msra.mxu0 0.0
    %509 = vmatprep.subr.mxu0 0.0
    %510 = vmatpush1.msra.mxu0 0.0
    %511 = vmatprep.subr.mxu0 0.0
    %512 = vmatpush1.msra.mxu0 0.0
    %513 = vmatprep.subr.mxu0 0.0
    %514 = vmatpush1.msra.mxu0 0.0
    %515 = vmatprep.subr.mxu0 0.0
    %516 = vmatpush1.msra.mxu0 0.0
    %517 = vmatprep.mubr.f32.mxu0 0.0
    %518 = vmatmul.mubr.f32.gmra.mrb[0].mxu0 %v238
    %v519 = vpop.f32.mrb[0].mxu0
    %v520 = vadd.f32 %v449, %v519
    %v521 = vpop.f32.mrb[0].mxu0
    %v522 = vadd.f32 %v451, %v521
    %523 = vdwg.mxu0
    %v524 = vmax.f32 %v520, 0.0
    %v525 = vmax.f32 %v522, 0.0
    %v526 = vld [vmem:[%s3] sm:$0xff]
    %v527 = vld [vmem:[%s3 + $0x8] sm:$0xff]
    %v528 = vld [vmem:[%s3 + $0x10] sm:$0xff]
    %v529 = vld [vmem:[%s3 + $0x18] sm:$0xff]
    %v530 = vld [vmem:[%s3 + $0x20] sm:$0xff]
    %v531 = vld [vmem:[%s3 + $0x28] sm:$0xff]
    %v532 = vld [vmem:[%s3 + $0x30] sm:$0xff]
    %v533 = vld [vmem:[%s3 + $0x38] sm:$0xff]
    %v534 = vld [vmem:[%s3 + $0x40] sm:$0xff]
    %v535 = vld [vmem:[%s3 + $0x48] sm:$0xff]
    %v536 = vld [vmem:[%s3 + $0x50] sm:$0xff]
    %v537 = vld [vmem:[%s3 + $0x58] sm:$0xff]
    %v538 = vld [vmem:[%s3 + $0x60] sm:$0xff]
    %v539 = vld [vmem:[%s3 + $0x68] sm:$0xff]
    %v540 = vld [vmem:[%s3 + $0x70] sm:$0xff]
    %v541 = vld [vmem:[%s3 + $0x78] sm:$0xff]
    %v542 = vld [vmem:[%s3 + $0x80] sm:$0xff]
    %v543 = vld [vmem:[%s3 + $0x88] sm:$0xff]
    %v544 = vld [vmem:[%s3 + $0x90] sm:$0xff]
    %v545 = vld [vmem:[%s3 + $0x98] sm:$0xff]
    %v546 = vld [vmem:[%s3 + $0xa0] sm:$0xff]
    %v547 = vld [vmem:[%s3 + $0xa8] sm:$0xff]
    %v548 = vld [vmem:[%s3 + $0xb0] sm:$0xff]
    %v549 = vld [vmem:[%s3 + $0xb8] sm:$0xff]
    %v550 = vld [vmem:[%s3 + $0xc0] sm:$0xff]
    %v551 = vld [vmem:[%s3 + $0xc8] sm:$0xff]
    %v552 = vld [vmem:[%s3 + $0xd0] sm:$0xff]
    %v553 = vld [vmem:[%s3 + $0xd8] sm:$0xff]
    %v554 = vld [vmem:[%s3 + $0xe0] sm:$0xff]
    %v555 = vld [vmem:[%s3 + $0xe8] sm:$0xff]
    %v556 = vld [vmem:[%s3 + $0xf0] sm:$0xff]
    %v557 = vld [vmem:[%s3 + $0xf8] sm:$0xff]
    %v558 = vld [vmem:[%s4] sm:$0x1]
    %v560 = vlaneseq
    %v561 = vshrl.u32 %v560, 7
    %v562 = vsub.s32 0, %v561
    %v563 = vrot.slane %v558, %v562
    %565 = vmatprep.subr.mxu0 0.0
    %566 = vmatpush1.msra.mxu0 %v526
    %567 = vmatprep.subr.mxu0 0.0
    %568 = vmatpush1.msra.mxu0 %v527
    %569 = vmatprep.subr.mxu0 0.0
    %570 = vmatpush1.msra.mxu0 %v528
    %571 = vmatprep.subr.mxu0 0.0
    %572 = vmatpush1.msra.mxu0 %v529
    %573 = vmatprep.subr.mxu0 0.0
    %574 = vmatpush1.msra.mxu0 %v530
    %575 = vmatprep.subr.mxu0 0.0
    %576 = vmatpush1.msra.mxu0 %v531
    %577 = vmatprep.subr.mxu0 0.0
    %578 = vmatpush1.msra.mxu0 %v532
    %579 = vmatprep.subr.mxu0 0.0
    %580 = vmatpush1.msra.mxu0 %v533
    %581 = vmatprep.subr.mxu0 0.0
    %582 = vmatpush1.msra.mxu0 %v534
    %583 = vmatprep.subr.mxu0 0.0
    %584 = vmatpush1.msra.mxu0 %v535
    %585 = vmatprep.subr.mxu0 0.0
    %586 = vmatpush1.msra.mxu0 %v536
    %587 = vmatprep.subr.mxu0 0.0
    %588 = vmatpush1.msra.mxu0 %v537
    %589 = vmatprep.subr.mxu0 0.0
    %590 = vmatpush1.msra.mxu0 %v538
    %591 = vmatprep.subr.mxu0 0.0
    %592 = vmatpush1.msra.mxu0 %v539
    %593 = vmatprep.subr.mxu0 0.0
    %594 = vmatpush1.msra.mxu0 %v540
    %595 = vmatprep.subr.mxu0 0.0
    %596 = vmatpush1.msra.mxu0 %v541
    %597 = vmatprep.subr.mxu0 0.0
    %598 = vmatpush1.msra.mxu0 %v542
    %599 = vmatprep.subr.mxu0 0.0
    %600 = vmatpush1.msra.mxu0 %v543
    %601 = vmatprep.subr.mxu0 0.0
    %602 = vmatpush1.msra.mxu0 %v544
    %603 = vmatprep.subr.mxu0 0.0
    %604 = vmatpush1.msra.mxu0 %v545
    %605 = vmatprep.subr.mxu0 0.0
    %606 = vmatpush1.msra.mxu0 %v546
    %607 = vmatprep.subr.mxu0 0.0
    %608 = vmatpush1.msra.mxu0 %v547
    %609 = vmatprep.subr.mxu0 0.0
    %610 = vmatpush1.msra.mxu0 %v548
    %611 = vmatprep.subr.mxu0 0.0
    %612 = vmatpush1.msra.mxu0 %v549
    %613 = vmatprep.subr.mxu0 0.0
    %614 = vmatpush1.msra.mxu0 %v550
    %615 = vmatprep.subr.mxu0 0.0
    %616 = vmatpush1.msra.mxu0 %v551
    %617 = vmatprep.subr.mxu0 0.0
    %618 = vmatpush1.msra.mxu0 %v552
    %619 = vmatprep.subr.mxu0 0.0
    %620 = vmatpush1.msra.mxu0 %v553
    %621 = vmatprep.subr.mxu0 0.0
    %622 = vmatpush1.msra.mxu0 %v554
    %623 = vmatprep.subr.mxu0 0.0
    %624 = vmatpush1.msra.mxu0 %v555
    %625 = vmatprep.subr.mxu0 0.0
    %626 = vmatpush1.msra.mxu0 %v556
    %627 = vmatprep.subr.mxu0 0.0
    %628 = vmatpush1.msra.mxu0 %v557
    %629 = vmatprep.mubr.f32.mxu0 %v525
    %630 = vmatmul.mubr.f32.gmra.mrb[0].mxu0 %v524
    %v631 = vpop.f32.mrb[0].mxu0
    %v632 = vadd.f32 %v563, %v631
    %v633 = vpop.f32.mrb[0].mxu0
    %634 = vdwg.mxu0
    %635 = vst [vmem:[#allocation2] sm:$0xff] %v632
    // Predicated region
    $region22: #{neural_net_forward.1} parent=1 // pred_check
      _
    $region23: #{neural_net_forward.1} parent=1 // pred_check_branch
      %637 = sbr.rel (0) target = $region25
    $region24: #{neural_net_forward.1} parent=1 // pred_region
      %s639 = ssub.s32 128, 128
      %640 = vsyncadd [#allocation3], %s639
      %s642 = sshll.u32 [#allocation2], 4
      %s643 = int_to_ptr.vmem [resolvable:$true] %s642
      %645 = dma.vmem_to_hbm [thread:$0]  %s643, 128, %s5, [#allocation3]
    $region25: #{neural_net_forward.1} parent=1 // pred_fallthru
      _
    // Predicated region
    $region26: #{neural_net_forward.1} parent=1 // pred_check
      _
    $region27: #{neural_net_forward.1} parent=1 // pred_check_branch
      %647 = sbr.rel (0) target = $region29
    $region28: #{neural_net_forward.1} parent=1 // pred_region
      %648 = dma.done [#allocation3], 128
    $region29: #{neural_net_forward.1} parent=1 // pred_fallthru
      _
    %649 = vsyncpa [#allocation3], 1

</llo_original>
